<compile_context>
chip_gen: v6e
topology: v6e:2x2x1
jax: 0.10.0
libtpu: 0.0.40
codegen_flags: <defaults>
</compile_context>

<pallas_src>
import functools

import jax
import jax.numpy as jnp
from jax.experimental import pallas as pl
from jax.experimental.pallas import tpu as pltpu


def _attention_kernel(x_ref, w_ref, b_ref, o_ref, *, B, N, d, inv_norm):
    """Single-invocation fused attention.

    x_ref : (B*N, dim)   all batches flattened onto the sublane axis
    w_ref : (dim, 3*d)   [wq | wk | wv] fused -> one MXU pass for q/k/v
    b_ref : (1, 3*d)     [bq | bk | bv] fused -> one broadcast add
    o_ref : (B, N, d)
    """
    # Fused q/k/v projection for every batch in one matmul (f32 accumulation).
    qkv = jnp.dot(x_ref[...], w_ref[...], preferred_element_type=jnp.float32)
    qkv = qkv + b_ref[...]                                   # (B*N, 3d)

    # Lane-slice q/k/v once for all batches (3 slices instead of 3*B).
    # Fold 1/sqrt(d) into q here (cheaper than scaling the (N,N) scores).
    q_all = qkv[:, 0:d] * inv_norm                           # (B*N, d)
    k_all = qkv[:, d:2 * d]                                  # (B*N, d)
    v_all = qkv[:, 2 * d:3 * d]                              # (B*N, d)

    # Per-batch attention.  B is a small static int -> fully unrolled Python
    # loop of plain 2-D MXU ops (no batched dot_general / reshape needed).
    for b in range(B):
        rows = slice(b * N, (b + 1) * N)                     # static sublane slice
        q = q_all[rows, :]                                   # (N, d)
        k = k_all[rows, :]                                   # (N, d)
        v = v_all[rows, :]                                   # (N, d)

        # Scores (Nq, Nk): contract last dims directly, no explicit k.T.
        s = jax.lax.dot_general(
            q, k, dimension_numbers=(((1,), (1,)), ((), ())),
            preferred_element_type=jnp.float32)

        # torch.softmax(..., dim=1) on (B, Nq, Nk) == softmax over the QUERY
        # axis, i.e. axis 0 of the per-batch (Nq, Nk) matrix.  Intentional --
        # do not "fix" to the key axis.
        m = jnp.max(s, axis=0, keepdims=True)
        e = jnp.exp(s - m)
        denom = jnp.sum(e, axis=0, keepdims=True)
        p = e * pl.reciprocal(denom, approx=True)            # EUP slot, ~free

        # TODO(synk): dropout on p omitted (identity in eval mode).

        out = jnp.dot(p, v, preferred_element_type=jnp.float32)
        o_ref[b] = out.astype(o_ref.dtype)


def attention_pallas(x, wq, bq, wk, bk, wv, bv):
    """x: (B, N, dim); weights (dim, d); biases (1, d). Returns (B, N, d)."""
    B, N, dim = x.shape
    d = wq.shape[1]
    inv_norm = 1.0 / (float(d) ** 0.5)

    # Fuse the three projections into one lane-wider matmul.
    w = jnp.concatenate([wq, wk, wv], axis=1)        # (dim, 3d)
    bias = jnp.concatenate([bq, bk, bv], axis=1)     # (1, 3d)
    x_flat = x.reshape(B * N, dim)                   # all batches, one tile

    kernel = functools.partial(
        _attention_kernel, B=B, N=N, d=d, inv_norm=inv_norm)

    # Single grid step: the whole problem lives in one VMEM block.
    # TODO(synk): for large N, switch to a query-tiled streaming softmax
    # (flash-style over the query axis) and "parallel" grid axes to use both
    # TensorCores on v7x.
    return pl.pallas_call(
        kernel,
        out_shape=jax.ShapeDtypeStruct((B, N, d), x.dtype),
        grid=(1,),
        in_specs=[
            pl.BlockSpec((B * N, dim), lambda i: (0, 0)),    # x (flattened)
            pl.BlockSpec((dim, 3 * d), lambda i: (0, 0)),    # fused weights
            pl.BlockSpec((1, 3 * d), lambda i: (0, 0)),      # fused biases
        ],
        out_specs=pl.BlockSpec((B, N, d), lambda i: (0, 0, 0)),
        compiler_params=pltpu.CompilerParams(
            dimension_semantics=("arbitrary",)),
    )(x_flat, w, bias)


def attention_reference(x, wq, bq, wk, bk, wv, bv):
    """Pure-JAX reference mirroring the PyTorch forward (eval-mode dropout)."""
    d = wq.shape[1]
    norm = float(d) ** 0.5
    q = x @ wq + bq[0]
    k = x @ wk + bk[0]
    v = x @ wv + bv[0]
    s = jnp.einsum("bqd,bkd->bqk", q, k) / norm
    p = jax.nn.softmax(s, axis=1)          # torch dim=1 (query axis)
    return jnp.einsum("bqk,bkd->bqd", p, v)


if __name__ == "__main__":
    # Small shapes consistent with the module: dim=32, heads=8 -> d=4.
    B, N, dim, heads = 2, 8, 32, 8
    d = dim // heads

    key = jax.random.PRNGKey(0)
    kx, kwq, kbq, kwk, kbk, kwv, kbv = jax.random.split(key, 7)

    x = jax.random.normal(kx, (B, N, dim), dtype=jnp.float32)

    # Deterministic nn.Linear-style init (uniform(-1/sqrt(dim), 1/sqrt(dim))).
    bound = 1.0 / (dim ** 0.5)
    init = lambda k, shape: jax.random.uniform(
        k, shape, dtype=jnp.float32, minval=-bound, maxval=bound)
    wq, wk, wv = init(kwq, (dim, d)), init(kwk, (dim, d)), init(kwv, (dim, d))
    bq, bk, bv = init(kbq, (1, d)), init(kbk, (1, d)), init(kbv, (1, d))

    out = attention_pallas(x, wq, bq, wk, bk, wv, bv)
    out = jax.block_until_ready(out)

    ref = attention_reference(x, wq, bq, wk, bk, wv, bv)
    assert out.shape == (B, N, d), out.shape
    # pl.reciprocal(approx=True) runs on the EUP with ~12-bit accuracy, so the
    # tolerance is slightly looser than for an exact divide.
    assert jnp.allclose(out, ref, atol=2e-3, rtol=2e-3), "mismatch vs reference"

    print("KERNEL_OK")
</pallas_src>

<mosaic_0001>
module attributes {stable_mosaic.version = 11 : i64} {
  func.func @_attention_kernel(%arg0: i32, %arg1: memref<16x32xf32, #tpu.memory_space<vmem>>, %arg2: memref<32x12xf32, #tpu.memory_space<vmem>>, %arg3: memref<1x12xf32, #tpu.memory_space<vmem>>, %arg4: memref<2x8x4xf32, #tpu.memory_space<vmem>>) attributes {dimension_semantics = [#tpu.dimension_semantics<arbitrary>], iteration_bounds = array<i64: 1>, scalar_prefetch = 0 : i64, scratch_operands = 0 : i64, tpu.core_type = #tpu.core_type<tc>, window_params = [{pipeline_mode = #tpu.pipeline_mode<synchronous>, transform_indices = @transform_0, window_bounds = array<i64: 16, 32>}, {pipeline_mode = #tpu.pipeline_mode<synchronous>, transform_indices = @transform_1, window_bounds = array<i64: 32, 12>}, {pipeline_mode = #tpu.pipeline_mode<synchronous>, transform_indices = @transform_2, window_bounds = array<i64: 1, 12>}, {pipeline_mode = #tpu.pipeline_mode<synchronous>, transform_indices = @transform_3, window_bounds = array<i64: 2, 8, 4>}]} {
    %c0 = arith.constant 0 : index
    %c0_0 = arith.constant 0 : index
    %0 = vector.load %arg1[%c0, %c0_0] : memref<16x32xf32, #tpu.memory_space<vmem>>, vector<16x32xf32>
    %c0_1 = arith.constant 0 : index
    %c0_2 = arith.constant 0 : index
    %1 = vector.load %arg2[%c0_1, %c0_2] : memref<32x12xf32, #tpu.memory_space<vmem>>, vector<32x12xf32>
    %cst = arith.constant dense<0.000000e+00> : vector<16x12xf32>
    %2 = tpu.matmul %0, %1, %cst {dimension_numbers = #tpu.dot_dimension_numbers<[1], [0], [0], [1], [0, 0, 1, 1], [], []>} : vector<16x32xf32>, vector<32x12xf32>, vector<16x12xf32> -> vector<16x12xf32>
    %c0_3 = arith.constant 0 : index
    %c0_4 = arith.constant 0 : index
    %3 = vector.load %arg3[%c0_3, %c0_4] : memref<1x12xf32, #tpu.memory_space<vmem>>, vector<1x12xf32>
    %4 = vector.broadcast %3 : vector<1x12xf32> to vector<16x12xf32>
    %5 = arith.addf %2, %4 : vector<16x12xf32>
    %6 = vector.extract_strided_slice %5 {offsets = [0, 0], sizes = [16, 4], strides = [1, 1]} : vector<16x12xf32> to vector<16x4xf32>
    %cst_5 = arith.constant 5.000000e-01 : f32
    %7 = vector.broadcast %cst_5 : f32 to vector<16x4xf32>
    %8 = arith.mulf %6, %7 : vector<16x4xf32>
    %9 = vector.extract_strided_slice %5 {offsets = [0, 4], sizes = [16, 4], strides = [1, 1]} : vector<16x12xf32> to vector<16x4xf32>
    %10 = vector.extract_strided_slice %5 {offsets = [0, 8], sizes = [16, 4], strides = [1, 1]} : vector<16x12xf32> to vector<16x4xf32>
    %11 = vector.extract_strided_slice %8 {offsets = [0, 0], sizes = [8, 4], strides = [1, 1]} : vector<16x4xf32> to vector<8x4xf32>
    %12 = vector.extract_strided_slice %9 {offsets = [0, 0], sizes = [8, 4], strides = [1, 1]} : vector<16x4xf32> to vector<8x4xf32>
    %13 = vector.extract_strided_slice %10 {offsets = [0, 0], sizes = [8, 4], strides = [1, 1]} : vector<16x4xf32> to vector<8x4xf32>
    %cst_6 = arith.constant dense<0.000000e+00> : vector<8x8xf32>
    %14 = tpu.matmul %11, %12, %cst_6 {dimension_numbers = #tpu.dot_dimension_numbers<[1], [1], [0], [0], [0, 0, 1, 0], [], []>} : vector<8x4xf32>, vector<8x4xf32>, vector<8x8xf32> -> vector<8x8xf32>
    %cst_7 = arith.constant dense<0xFF800000> : vector<8xf32>
    %15 = vector.multi_reduction <maximumf>, %14, %cst_7 [0] : vector<8x8xf32> to vector<8xf32>
    %16 = vector.shape_cast %15 : vector<8xf32> to vector<1x8xf32>
    %17 = vector.broadcast %16 : vector<1x8xf32> to vector<8x8xf32>
    %18 = arith.subf %14, %17 : vector<8x8xf32>
    %19 = math.exp %18 : vector<8x8xf32>
    %cst_8 = arith.constant dense<0.000000e+00> : vector<8xf32>
    %20 = vector.multi_reduction <add>, %19, %cst_8 [0] : vector<8x8xf32> to vector<8xf32>
    %21 = vector.shape_cast %20 : vector<8xf32> to vector<1x8xf32>
    %22 = tpu.reciprocal %21 {approx = true} : vector<1x8xf32> -> vector<1x8xf32>
    %23 = vector.broadcast %22 : vector<1x8xf32> to vector<8x8xf32>
    %24 = arith.mulf %19, %23 : vector<8x8xf32>
    %cst_9 = arith.constant dense<0.000000e+00> : vector<8x4xf32>
    %25 = tpu.matmul %24, %13, %cst_9 {dimension_numbers = #tpu.dot_dimension_numbers<[1], [0], [0], [1], [0, 0, 1, 1], [], []>} : vector<8x8xf32>, vector<8x4xf32>, vector<8x4xf32> -> vector<8x4xf32>
    %c0_10 = arith.constant 0 : index
    %c0_11 = arith.constant 0 : index
    %c0_12 = arith.constant 0 : index
    %26 = vector.load %arg4[%c0_10, %c0_11, %c0_12] : memref<2x8x4xf32, #tpu.memory_space<vmem>>, vector<1x8x4xf32>
    %27 = vector.shape_cast %26 : vector<1x8x4xf32> to vector<8x4xf32>
    %28 = vector.shape_cast %25 : vector<8x4xf32> to vector<1x8x4xf32>
    tpu.vector_store %arg4[%c0_10, %c0_11, %c0_12], %28 {strides = array<i32>} : memref<2x8x4xf32, #tpu.memory_space<vmem>>, vector<1x8x4xf32>,
    %29 = vector.extract_strided_slice %8 {offsets = [8, 0], sizes = [8, 4], strides = [1, 1]} : vector<16x4xf32> to vector<8x4xf32>
    %30 = vector.extract_strided_slice %9 {offsets = [8, 0], sizes = [8, 4], strides = [1, 1]} : vector<16x4xf32> to vector<8x4xf32>
    %31 = vector.extract_strided_slice %10 {offsets = [8, 0], sizes = [8, 4], strides = [1, 1]} : vector<16x4xf32> to vector<8x4xf32>
    %cst_13 = arith.constant dense<0.000000e+00> : vector<8x8xf32>
    %32 = tpu.matmul %29, %30, %cst_13 {dimension_numbers = #tpu.dot_dimension_numbers<[1], [1], [0], [0], [0, 0, 1, 0], [], []>} : vector<8x4xf32>, vector<8x4xf32>, vector<8x8xf32> -> vector<8x8xf32>
    %cst_14 = arith.constant dense<0xFF800000> : vector<8xf32>
    %33 = vector.multi_reduction <maximumf>, %32, %cst_14 [0] : vector<8x8xf32> to vector<8xf32>
    %34 = vector.shape_cast %33 : vector<8xf32> to vector<1x8xf32>
    %35 = vector.broadcast %34 : vector<1x8xf32> to vector<8x8xf32>
    %36 = arith.subf %32, %35 : vector<8x8xf32>
    %37 = math.exp %36 : vector<8x8xf32>
    %cst_15 = arith.constant dense<0.000000e+00> : vector<8xf32>
    %38 = vector.multi_reduction <add>, %37, %cst_15 [0] : vector<8x8xf32> to vector<8xf32>
    %39 = vector.shape_cast %38 : vector<8xf32> to vector<1x8xf32>
    %40 = tpu.reciprocal %39 {approx = true} : vector<1x8xf32> -> vector<1x8xf32>
    %41 = vector.broadcast %40 : vector<1x8xf32> to vector<8x8xf32>
    %42 = arith.mulf %37, %41 : vector<8x8xf32>
    %cst_16 = arith.constant dense<0.000000e+00> : vector<8x4xf32>
    %43 = tpu.matmul %42, %31, %cst_16 {dimension_numbers = #tpu.dot_dimension_numbers<[1], [0], [0], [1], [0, 0, 1, 1], [], []>} : vector<8x8xf32>, vector<8x4xf32>, vector<8x4xf32> -> vector<8x4xf32>
    %c1 = arith.constant 1 : index
    %c0_17 = arith.constant 0 : index
    %c0_18 = arith.constant 0 : index
    %44 = vector.load %arg4[%c1, %c0_17, %c0_18] : memref<2x8x4xf32, #tpu.memory_space<vmem>>, vector<1x8x4xf32>
    %45 = vector.shape_cast %44 : vector<1x8x4xf32> to vector<8x4xf32>
    %46 = vector.shape_cast %43 : vector<8x4xf32> to vector<1x8x4xf32>
    tpu.vector_store %arg4[%c1, %c0_17, %c0_18], %46 {strides = array<i32>} : memref<2x8x4xf32, #tpu.memory_space<vmem>>, vector<1x8x4xf32>,
    return
  }
  func.func @transform_0(%arg0: i32) -> (i32, i32) {
    %c0_i32 = arith.constant 0 : i32
    %c0_i32_0 = arith.constant 0 : i32
    %c0_i32_1 = arith.constant 0 : i32
    return %c0_i32, %c0_i32_0 : i32, i32
  }
  func.func @transform_1(%arg0: i32) -> (i32, i32) {
    %c0_i32 = arith.constant 0 : i32
    %c0_i32_0 = arith.constant 0 : i32
    %c0_i32_1 = arith.constant 0 : i32
    return %c0_i32, %c0_i32_0 : i32, i32
  }
  func.func @transform_2(%arg0: i32) -> (i32, i32) {
    %c0_i32 = arith.constant 0 : i32
    %c0_i32_0 = arith.constant 0 : i32
    %c0_i32_1 = arith.constant 0 : i32
    return %c0_i32, %c0_i32_0 : i32, i32
  }
  func.func @transform_3(%arg0: i32) -> (i32, i32, i32) {
    %c0_i32 = arith.constant 0 : i32
    %c0_i32_0 = arith.constant 0 : i32
    %c0_i32_1 = arith.constant 0 : i32
    %c0_i32_2 = arith.constant 0 : i32
    return %c0_i32, %c0_i32_0, %c0_i32_1 : i32, i32, i32
  }
}

</mosaic_0001>

<llo_original>
// kernel: tpu_custom_call.1
$region0: #{tpu_custom_call.1}
  #allocation0 [shape = 'u32[]', space=smem, size = 0x4, offset = 0x4, fixed_abs, tag = 'smem constant byte address 0x4 - core index']
  #allocation1 [shape = 'u32[144,128]{1,0:T(1,128)}', space=vmem, size = 0x12000, scoped, tag = 'internal scratch']
  %s0 = inlined_call_operand.vmem [shape: f32[16,32], index: 0, kind: input, shape index: {}]
  %s1 = inlined_call_operand.vmem [shape: f32[32,12], index: 1, kind: input, shape index: {}]
  %s2 = inlined_call_operand.vmem [shape: f32[1,12], index: 2, kind: input, shape index: {}]
  %s3 = inlined_call_operand.vmem [shape: f32[2,8,4], index: 3, kind: output, shape index: {}]
  %s4 = sld [smem:[#allocation0]]
  $region22: #{tpu_custom_call.1} parent=0
    _
  %s6 = ssub.s32 1, %s4
  %s7 = scalar_select 0, %s6, %s4
  // Predicated region
  $region2: #{tpu_custom_call.1} parent=0 // pred_check
    _
  $region3: #{tpu_custom_call.1} parent=0 // pred_check_branch
    %9 = sbr.rel (0) target = $region5
  $region4: #{tpu_custom_call.1} parent=0 // pred_region
    _
  $region5: #{tpu_custom_call.1} parent=0 // pred_fallthru
    _
  // Predicated region
  $region6: #{tpu_custom_call.1} parent=0 // pred_check
    _
  $region7: #{tpu_custom_call.1} parent=0 // pred_check_branch
    %11 = sbr.rel (0) target = $region9
  $region8: #{tpu_custom_call.1} parent=0 // pred_region
    _
  $region9: #{tpu_custom_call.1} parent=0 // pred_fallthru
    _
  // Predicated region
  $region10: #{tpu_custom_call.1} parent=0 // pred_check
    _
  $region11: #{tpu_custom_call.1} parent=0 // pred_check_branch
    %13 = sbr.rel (0) target = $region13
  $region12: #{tpu_custom_call.1} parent=0 // pred_region
    _
  $region13: #{tpu_custom_call.1} parent=0 // pred_fallthru
    _
  %v14 = vld [vmem:[%s0] sm:$0xff]
  %v15 = vld [vmem:[%s0 + $0x8] sm:$0xff]
  %v16 = vld [vmem:[%s1] sm:$0xff]
  %v17 = vld [vmem:[%s1 + $0x8] sm:$0xff]
  %v18 = vld [vmem:[%s1 + $0x10] sm:$0xff]
  %v19 = vld [vmem:[%s1 + $0x18] sm:$0xff]
  %v20 = vld [vmem:[%s2] sm:$0x1]
  %v22 = vlaneseq
  %v23 = vshrl.u32 %v22, 7
  %v24 = vsub.s32 0, %v23
  %v25 = vrot.slane %v20, %v24
  %vm27 = vcmask 261120
  %v29 = vsel %vm27, %v14, 0
  %v32 = vsel %vm27, %v15, 0
  %34 = vmatprep.subr.mxu0 0.0
  %35 = vmatpush1.msra.mxu0 0.0
  %36 = vmatprep.subr.mxu0 0.0
  %37 = vmatpush1.msra.mxu0 0.0
  %38 = vmatprep.subr.mxu0 0.0
  %39 = vmatpush1.msra.mxu0 0.0
  %40 = vmatprep.subr.mxu0 0.0
  %41 = vmatpush1.msra.mxu0 0.0
  %42 = vmatprep.subr.mxu0 0.0
  %43 = vmatpush1.msra.mxu0 0.0
  %44 = vmatprep.subr.mxu0 0.0
  %45 = vmatpush1.msra.mxu0 0.0
  %46 = vmatprep.subr.mxu0 0.0
  %47 = vmatpush1.msra.mxu0 0.0
  %48 = vmatprep.subr.mxu0 0.0
  %49 = vmatpush1.msra.mxu0 0.0
  %50 = vmatprep.subr.mxu0 0.0
  %51 = vmatpush1.msra.mxu0 0.0
  %52 = vmatprep.subr.mxu0 0.0
  %53 = vmatpush1.msra.mxu0 0.0
  %54 = vmatprep.subr.mxu0 0.0
  %55 = vmatpush1.msra.mxu0 0.0
  %56 = vmatprep.subr.mxu0 0.0
  %57 = vmatpush1.msra.mxu0 0.0
  %58 = vmatprep.subr.mxu0 0.0
  %59 = vmatpush1.msra.mxu0 %v19
  %60 = vmatprep.subr.mxu0 0.0
  %61 = vmatpush1.msra.mxu0 %v18
  %62 = vmatprep.subr.mxu0 0.0
  %63 = vmatpush1.msra.mxu0 %v17
  %64 = vmatprep.subr.mxu0 0.0
  %65 = vmatpush1.msra.mxu0 %v16
  %66 = vmatprep.subr.mxu0 0.0
  %67 = vmatpush2.msra.mxu0 0.0
  %68 = vmatprep.subr.mxu0 0.0
  %69 = vmatpush2.msra.mxu0 0.0
  %70 = vmatprep.subr.mxu0 0.0
  %71 = vmatpush2.msra.mxu0 0.0
  %72 = vmatprep.subr.mxu0 0.0
  %73 = vmatpush2.msra.mxu0 0.0
  %74 = vmatprep.subr.mxu0 0.0
  %75 = vmatpush2.msra.mxu0 0.0
  %76 = vmatprep.subr.mxu0 0.0
  %77 = vmatpush2.msra.mxu0 0.0
  %78 = vmatprep.subr.mxu0 0.0
  %79 = vmatpush2.msra.mxu0 0.0
  %80 = vmatprep.subr.mxu0 0.0
  %81 = vmatpush2.msra.mxu0 0.0
  %82 = vmatprep.subr.mxu0 0.0
  %83 = vmatpush2.msra.mxu0 0.0
  %84 = vmatprep.subr.mxu0 0.0
  %85 = vmatpush2.msra.mxu0 0.0
  %86 = vmatprep.subr.mxu0 0.0
  %87 = vmatpush2.msra.mxu0 0.0
  %88 = vmatprep.subr.mxu0 0.0
  %89 = vmatpush2.msra.mxu0 0.0
  %90 = vmatprep.subr.mxu0 0.0
  %91 = vmatpush2.msra.mxu0 0.0
  %92 = vmatprep.subr.mxu0 0.0
  %93 = vmatpush2.msra.mxu0 0.0
  %94 = vmatprep.subr.mxu0 0.0
  %95 = vmatpush2.msra.mxu0 0.0
  %96 = vmatprep.subr.mxu0 0.0
  %97 = vmatpush2.msra.mxu0 0.0
  %98 = vmatprep.mubr.f32.mxu0 0.0
  %99 = vmatmul.mubr.f32.gmra.mxu0 %v29
  %v100 = vpop.f32.mrf.mxu0
  %v101 = vadd.f32 %v25, %v100
  %v102 = vpop.f32.mrf.mxu0
  %103 = vmatprep.mubr.f32.mxu0 0.0
  %104 = vmatmul.mubr.f32.gmra.mxu0 %v32
  %v105 = vpop.f32.mrf.mxu0
  %v106 = vadd.f32 %v25, %v105
  %v107 = vpop.f32.mrf.mxu0
  %108 = vdwg.mxu0
  %v109 = vmul.f32 %v101, 0.5
  %v110 = vmul.f32 %v106, 0.5
  %112 = vrot.lane.b32.xlu0 %v101, 124
  %v113 = vpop.permute.xlu0 %112
  %vm114 = vcmask 31744
  %v116 = vsel %vm114, %v109, 0
  %v118 = vsel %vm114, %v113, 0
  %120 = vmatprep.subr.mxu0 0.0
  %121 = vmatpush1.xpose.msra.mxu0 0.0
  %122 = vmatprep.subr.mxu0 0.0
  %123 = vmatpush1.xpose.msra.mxu0 0.0
  %124 = vmatprep.subr.mxu0 0.0
  %125 = vmatpush1.xpose.msra.mxu0 0.0
  %126 = vmatprep.subr.mxu0 0.0
  %127 = vmatpush1.xpose.msra.mxu0 0.0
  %128 = vmatprep.subr.mxu0 0.0
  %129 = vmatpush1.xpose.msra.mxu0 0.0
  %130 = vmatprep.subr.mxu0 0.0
  %131 = vmatpush1.xpose.msra.mxu0 0.0
  %132 = vmatprep.subr.mxu0 0.0
  %133 = vmatpush1.xpose.msra.mxu0 0.0
  %134 = vmatprep.subr.mxu0 0.0
  %135 = vmatpush1.xpose.msra.mxu0 0.0
  %136 = vmatprep.subr.mxu0 0.0
  %137 = vmatpush1.xpose.msra.mxu0 0.0
  %138 = vmatprep.subr.mxu0 0.0
  %139 = vmatpush1.xpose.msra.mxu0 0.0
  %140 = vmatprep.subr.mxu0 0.0
  %141 = vmatpush1.xpose.msra.mxu0 0.0
  %142 = vmatprep.subr.mxu0 0.0
  %143 = vmatpush1.xpose.msra.mxu0 0.0
  %144 = vmatprep.subr.mxu0 0.0
  %145 = vmatpush1.xpose.msra.mxu0 0.0
  %146 = vmatprep.subr.mxu0 0.0
  %147 = vmatpush1.xpose.msra.mxu0 0.0
  %148 = vmatprep.subr.mxu0 0.0
  %149 = vmatpush1.xpose.msra.mxu0 0.0
  %150 = vmatprep.subr.mxu0 0.0
  %151 = vmatpush1.xpose.msra.mxu0 %v118
  %152 = vmatprep.subr.mxu0 0.0
  %153 = vmatpush2.xpose.msra.mxu0 0.0
  %154 = vmatprep.subr.mxu0 0.0
  %155 = vmatpush2.xpose.msra.mxu0 0.0
  %156 = vmatprep.subr.mxu0 0.0
  %157 = vmatpush2.xpose.msra.mxu0 0.0
  %158 = vmatprep.subr.mxu0 0.0
  %159 = vmatpush2.xpose.msra.mxu0 0.0
  %160 = vmatprep.subr.mxu0 0.0
  %161 = vmatpush2.xpose.msra.mxu0 0.0
  %162 = vmatprep.subr.mxu0 0.0
  %163 = vmatpush2.xpose.msra.mxu0 0.0
  %164 = vmatprep.subr.mxu0 0.0
  %165 = vmatpush2.xpose.msra.mxu0 0.0
  %166 = vmatprep.subr.mxu0 0.0
  %167 = vmatpush2.xpose.msra.mxu0 0.0
  %168 = vmatprep.subr.mxu0 0.0
  %169 = vmatpush2.xpose.msra.mxu0 0.0
  %170 = vmatprep.subr.mxu0 0.0
  %171 = vmatpush2.xpose.msra.mxu0 0.0
  %172 = vmatprep.subr.mxu0 0.0
  %173 = vmatpush2.xpose.msra.mxu0 0.0
  %174 = vmatprep.subr.mxu0 0.0
  %175 = vmatpush2.xpose.msra.mxu0 0.0
  %176 = vmatprep.subr.mxu0 0.0
  %177 = vmatpush2.xpose.msra.mxu0 0.0
  %178 = vmatprep.subr.mxu0 0.0
  %179 = vmatpush2.xpose.msra.mxu0 0.0
  %180 = vmatprep.subr.mxu0 0.0
  %181 = vmatpush2.xpose.msra.mxu0 0.0
  %182 = vmatprep.subr.mxu0 0.0
  %183 = vmatpush2.xpose.msra.mxu0 0.0
  %184 = vmatprep.mubr.f32.mxu0 0.0
  %185 = vmatmul.mubr.f32.gmra.mxu0 %v116
  %v186 = vpop.f32.mrf.mxu0
  %v187 = vadd.f32 0.0, %v186
  %v188 = vpop.f32.mrf.mxu0
  %189 = vdwg.mxu0
  %vm190 = vcmask 64512
  %v191 = vsel %vm190, %v187, -inf
  %v192 = vrot.slane %v191, 4
  %v193 = vmax.f32 %v191, %v192
  %v194 = vrot.slane %v193, 2
  %v195 = vmax.f32 %v193, %v194
  %v196 = vrot.slane %v195, 1
  %v197 = vmax.f32 %v195, %v196
  %v198 = vsub.f32 %v187, %v197
  %v199 = vmul.f32 %v198, 1.442695
  %v200 = vpow.pop %v199
  %v201 = vsel %vm190, %v200, 0.0
  %v202 = vrot.slane %v201, 4
  %v203 = vadd.f32 %v201, %v202
  %v204 = vrot.slane %v203, 2
  %v205 = vadd.f32 %v203, %v204
  %v206 = vrot.slane %v205, 1
  %v207 = vadd.f32 %v205, %v206
  %v208 = vrcp.pop %v207
  %v209 = vmul.f32 %v200, %v208
  %210 = vrot.lane.b32.xlu0 %v101, 120
  %v211 = vpop.permute.xlu0 %210
  %v214 = vsel %vm190, %v209, 0
  %216 = vmatprep.subr.mxu0 0.0
  %217 = vmatpush1.msra.mxu0 0.0
  %218 = vmatprep.subr.mxu0 0.0
  %219 = vmatpush1.msra.mxu0 0.0
  %220 = vmatprep.subr.mxu0 0.0
  %221 = vmatpush1.msra.mxu0 0.0
  %222 = vmatprep.subr.mxu0 0.0
  %223 = vmatpush1.msra.mxu0 0.0
  %224 = vmatprep.subr.mxu0 0.0
  %225 = vmatpush1.msra.mxu0 0.0
  %226 = vmatprep.subr.mxu0 0.0
  %227 = vmatpush1.msra.mxu0 0.0
  %228 = vmatprep.subr.mxu0 0.0
  %229 = vmatpush1.msra.mxu0 0.0
  %230 = vmatprep.subr.mxu0 0.0
  %231 = vmatpush1.msra.mxu0 0.0
  %232 = vmatprep.subr.mxu0 0.0
  %233 = vmatpush1.msra.mxu0 0.0
  %234 = vmatprep.subr.mxu0 0.0
  %235 = vmatpush1.msra.mxu0 0.0
  %236 = vmatprep.subr.mxu0 0.0
  %237 = vmatpush1.msra.mxu0 0.0
  %238 = vmatprep.subr.mxu0 0.0
  %239 = vmatpush1.msra.mxu0 0.0
  %240 = vmatprep.subr.mxu0 0.0
  %241 = vmatpush1.msra.mxu0 0.0
  %242 = vmatprep.subr.mxu0 0.0
  %243 = vmatpush1.msra.mxu0 0.0
  %244 = vmatprep.subr.mxu0 0.0
  %245 = vmatpush1.msra.mxu0 0.0
  %246 = vmatprep.subr.mxu0 0.0
  %247 = vmatpush1.msra.mxu0 %v211
  %248 = vmatprep.subr.mxu0 0.0
  %249 = vmatpush2.msra.mxu0 0.0
  %250 = vmatprep.subr.mxu0 0.0
  %251 = vmatpush2.msra.mxu0 0.0
  %252 = vmatprep.subr.mxu0 0.0
  %253 = vmatpush2.msra.mxu0 0.0
  %254 = vmatprep.subr.mxu0 0.0
  %255 = vmatpush2.msra.mxu0 0.0
  %256 = vmatprep.subr.mxu0 0.0
  %257 = vmatpush2.msra.mxu0 0.0
  %258 = vmatprep.subr.mxu0 0.0
  %259 = vmatpush2.msra.mxu0 0.0
  %260 = vmatprep.subr.mxu0 0.0
  %261 = vmatpush2.msra.mxu0 0.0
  %262 = vmatprep.subr.mxu0 0.0
  %263 = vmatpush2.msra.mxu0 0.0
  %264 = vmatprep.subr.mxu0 0.0
  %265 = vmatpush2.msra.mxu0 0.0
  %266 = vmatprep.subr.mxu0 0.0
  %267 = vmatpush2.msra.mxu0 0.0
  %268 = vmatprep.subr.mxu0 0.0
  %269 = vmatpush2.msra.mxu0 0.0
  %270 = vmatprep.subr.mxu0 0.0
  %271 = vmatpush2.msra.mxu0 0.0
  %272 = vmatprep.subr.mxu0 0.0
  %273 = vmatpush2.msra.mxu0 0.0
  %274 = vmatprep.subr.mxu0 0.0
  %275 = vmatpush2.msra.mxu0 0.0
  %276 = vmatprep.subr.mxu0 0.0
  %277 = vmatpush2.msra.mxu0 0.0
  %278 = vmatprep.subr.mxu0 0.0
  %279 = vmatpush2.msra.mxu0 0.0
  %280 = vmatprep.mubr.f32.mxu0 0.0
  %281 = vmatmul.mubr.f32.gmra.mxu0 %v214
  %v282 = vpop.f32.mrf.mxu0
  %v283 = vadd.f32 0.0, %v282
  %v284 = vpop.f32.mrf.mxu0
  %285 = vdwg.mxu0
  %286 = vst.msk [vmem:[%s3] sm:$0xff] %vm114, %v283
  %288 = vrot.lane.b32.xlu0 %v106, 124
  %v289 = vpop.permute.xlu0 %288
  %v291 = vsel %vm114, %v110, 0
  %v293 = vsel %vm114, %v289, 0
  %295 = vmatprep.subr.mxu0 0.0
  %296 = vmatpush1.xpose.msra.mxu0 0.0
  %297 = vmatprep.subr.mxu0 0.0
  %298 = vmatpush1.xpose.msra.mxu0 0.0
  %299 = vmatprep.subr.mxu0 0.0
  %300 = vmatpush1.xpose.msra.mxu0 0.0
  %301 = vmatprep.subr.mxu0 0.0
  %302 = vmatpush1.xpose.msra.mxu0 0.0
  %303 = vmatprep.subr.mxu0 0.0
  %304 = vmatpush1.xpose.msra.mxu0 0.0
  %305 = vmatprep.subr.mxu0 0.0
  %306 = vmatpush1.xpose.msra.mxu0 0.0
  %307 = vmatprep.subr.mxu0 0.0
  %308 = vmatpush1.xpose.msra.mxu0 0.0
  %309 = vmatprep.subr.mxu0 0.0
  %310 = vmatpush1.xpose.msra.mxu0 0.0
  %311 = vmatprep.subr.mxu0 0.0
  %312 = vmatpush1.xpose.msra.mxu0 0.0
  %313 = vmatprep.subr.mxu0 0.0
  %314 = vmatpush1.xpose.msra.mxu0 0.0
  %315 = vmatprep.subr.mxu0 0.0
  %316 = vmatpush1.xpose.msra.mxu0 0.0
  %317 = vmatprep.subr.mxu0 0.0
  %318 = vmatpush1.xpose.msra.mxu0 0.0
  %319 = vmatprep.subr.mxu0 0.0
  %320 = vmatpush1.xpose.msra.mxu0 0.0
  %321 = vmatprep.subr.mxu0 0.0
  %322 = vmatpush1.xpose.msra.mxu0 0.0
  %323 = vmatprep.subr.mxu0 0.0
  %324 = vmatpush1.xpose.msra.mxu0 0.0
  %325 = vmatprep.subr.mxu0 0.0
  %326 = vmatpush1.xpose.msra.mxu0 %v293
  %327 = vmatprep.subr.mxu0 0.0
  %328 = vmatpush2.xpose.msra.mxu0 0.0
  %329 = vmatprep.subr.mxu0 0.0
  %330 = vmatpush2.xpose.msra.mxu0 0.0
  %331 = vmatprep.subr.mxu0 0.0
  %332 = vmatpush2.xpose.msra.mxu0 0.0
  %333 = vmatprep.subr.mxu0 0.0
  %334 = vmatpush2.xpose.msra.mxu0 0.0
  %335 = vmatprep.subr.mxu0 0.0
  %336 = vmatpush2.xpose.msra.mxu0 0.0
  %337 = vmatprep.subr.mxu0 0.0
  %338 = vmatpush2.xpose.msra.mxu0 0.0
  %339 = vmatprep.subr.mxu0 0.0
  %340 = vmatpush2.xpose.msra.mxu0 0.0
  %341 = vmatprep.subr.mxu0 0.0
  %342 = vmatpush2.xpose.msra.mxu0 0.0
  %343 = vmatprep.subr.mxu0 0.0
  %344 = vmatpush2.xpose.msra.mxu0 0.0
  %345 = vmatprep.subr.mxu0 0.0
  %346 = vmatpush2.xpose.msra.mxu0 0.0
  %347 = vmatprep.subr.mxu0 0.0
  %348 = vmatpush2.xpose.msra.mxu0 0.0
  %349 = vmatprep.subr.mxu0 0.0
  %350 = vmatpush2.xpose.msra.mxu0 0.0
  %351 = vmatprep.subr.mxu0 0.0
  %352 = vmatpush2.xpose.msra.mxu0 0.0
  %353 = vmatprep.subr.mxu0 0.0
  %354 = vmatpush2.xpose.msra.mxu0 0.0
  %355 = vmatprep.subr.mxu0 0.0
  %356 = vmatpush2.xpose.msra.mxu0 0.0
  %357 = vmatprep.subr.mxu0 0.0
  %358 = vmatpush2.xpose.msra.mxu0 0.0
  %359 = vmatprep.mubr.f32.mxu0 0.0
  %360 = vmatmul.mubr.f32.gmra.mxu0 %v291
  %v361 = vpop.f32.mrf.mxu0
  %v362 = vadd.f32 0.0, %v361
  %v363 = vpop.f32.mrf.mxu0
  %364 = vdwg.mxu0
  %v365 = vsel %vm190, %v362, -inf
  %v366 = vrot.slane %v365, 4
  %v367 = vmax.f32 %v365, %v366
  %v368 = vrot.slane %v367, 2
  %v369 = vmax.f32 %v367, %v368
  %v370 = vrot.slane %v369, 1
  %v371 = vmax.f32 %v369, %v370
  %v372 = vsub.f32 %v362, %v371
  %v373 = vmul.f32 %v372, 1.442695
  %v374 = vpow.pop %v373
  %v375 = vsel %vm190, %v374, 0.0
  %v376 = vrot.slane %v375, 4
  %v377 = vadd.f32 %v375, %v376
  %v378 = vrot.slane %v377, 2
  %v379 = vadd.f32 %v377, %v378
  %v380 = vrot.slane %v379, 1
  %v381 = vadd.f32 %v379, %v380
  %v382 = vrcp.pop %v381
  %v383 = vmul.f32 %v374, %v382
  %384 = vrot.lane.b32.xlu0 %v106, 120
  %v385 = vpop.permute.xlu0 %384
  %v388 = vsel %vm190, %v383, 0
  %390 = vmatprep.subr.mxu0 0.0
  %391 = vmatpush1.msra.mxu0 0.0
  %392 = vmatprep.subr.mxu0 0.0
  %393 = vmatpush1.msra.mxu0 0.0
  %394 = vmatprep.subr.mxu0 0.0
  %395 = vmatpush1.msra.mxu0 0.0
  %396 = vmatprep.subr.mxu0 0.0
  %397 = vmatpush1.msra.mxu0 0.0
  %398 = vmatprep.subr.mxu0 0.0
  %399 = vmatpush1.msra.mxu0 0.0
  %400 = vmatprep.subr.mxu0 0.0
  %401 = vmatpush1.msra.mxu0 0.0
  %402 = vmatprep.subr.mxu0 0.0
  %403 = vmatpush1.msra.mxu0 0.0
  %404 = vmatprep.subr.mxu0 0.0
  %405 = vmatpush1.msra.mxu0 0.0
  %406 = vmatprep.subr.mxu0 0.0
  %407 = vmatpush1.msra.mxu0 0.0
  %408 = vmatprep.subr.mxu0 0.0
  %409 = vmatpush1.msra.mxu0 0.0
  %410 = vmatprep.subr.mxu0 0.0
  %411 = vmatpush1.msra.mxu0 0.0
  %412 = vmatprep.subr.mxu0 0.0
  %413 = vmatpush1.msra.mxu0 0.0
  %414 = vmatprep.subr.mxu0 0.0
  %415 = vmatpush1.msra.mxu0 0.0
  %416 = vmatprep.subr.mxu0 0.0
  %417 = vmatpush1.msra.mxu0 0.0
  %418 = vmatprep.subr.mxu0 0.0
  %419 = vmatpush1.msra.mxu0 0.0
  %420 = vmatprep.subr.mxu0 0.0
  %421 = vmatpush1.msra.mxu0 %v385
  %422 = vmatprep.subr.mxu0 0.0
  %423 = vmatpush2.msra.mxu0 0.0
  %424 = vmatprep.subr.mxu0 0.0
  %425 = vmatpush2.msra.mxu0 0.0
  %426 = vmatprep.subr.mxu0 0.0
  %427 = vmatpush2.msra.mxu0 0.0
  %428 = vmatprep.subr.mxu0 0.0
  %429 = vmatpush2.msra.mxu0 0.0
  %430 = vmatprep.subr.mxu0 0.0
  %431 = vmatpush2.msra.mxu0 0.0
  %432 = vmatprep.subr.mxu0 0.0
  %433 = vmatpush2.msra.mxu0 0.0
  %434 = vmatprep.subr.mxu0 0.0
  %435 = vmatpush2.msra.mxu0 0.0
  %436 = vmatprep.subr.mxu0 0.0
  %437 = vmatpush2.msra.mxu0 0.0
  %438 = vmatprep.subr.mxu0 0.0
  %439 = vmatpush2.msra.mxu0 0.0
  %440 = vmatprep.subr.mxu0 0.0
  %441 = vmatpush2.msra.mxu0 0.0
  %442 = vmatprep.subr.mxu0 0.0
  %443 = vmatpush2.msra.mxu0 0.0
  %444 = vmatprep.subr.mxu0 0.0
  %445 = vmatpush2.msra.mxu0 0.0
  %446 = vmatprep.subr.mxu0 0.0
  %447 = vmatpush2.msra.mxu0 0.0
  %448 = vmatprep.subr.mxu0 0.0
  %449 = vmatpush2.msra.mxu0 0.0
  %450 = vmatprep.subr.mxu0 0.0
  %451 = vmatpush2.msra.mxu0 0.0
  %452 = vmatprep.subr.mxu0 0.0
  %453 = vmatpush2.msra.mxu0 0.0
  %454 = vmatprep.mubr.f32.mxu0 0.0
  %455 = vmatmul.mubr.f32.gmra.mxu0 %v388
  %v456 = vpop.f32.mrf.mxu0
  %v457 = vadd.f32 0.0, %v456
  %v458 = vpop.f32.mrf.mxu0
  %459 = vdwg.mxu0
  %s460 = scalar_lea.vmem %s3, 8
  %461 = vst.msk [vmem:[%s460] sm:$0xff] %vm114, %v457
  // Predicated region
  $region14: #{tpu_custom_call.1} parent=0 // pred_check
    _
  $region15: #{tpu_custom_call.1} parent=0 // pred_check_branch
    %463 = sbr.rel (0) target = $region17
  $region16: #{tpu_custom_call.1} parent=0 // pred_region
    _
  $region17: #{tpu_custom_call.1} parent=0 // pred_fallthru
    _
  // Predicated region
  $region18: #{tpu_custom_call.1} parent=0 // pred_check
    _
  $region19: #{tpu_custom_call.1} parent=0 // pred_check_branch
    %465 = sbr.rel (0) target = $region21
  $region20: #{tpu_custom_call.1} parent=0 // pred_region
    _
  $region21: #{tpu_custom_call.1} parent=0 // pred_fallthru
    _

</llo_original>
